<compile_context>
chip_gen: v7x
topology: tpu7x:2x2x1
jax: 0.10.0
libtpu: 0.0.40
codegen_flags: <defaults>
</compile_context>

<pallas_src>
import functools

import jax
import jax.numpy as jnp
from jax.experimental import pallas as pl
from jax.experimental.pallas import tpu as pltpu


LAYER_NAMES = ('features.0', 'features.7', 'features.14',
               'features.27', 'features.40')
LAYER_TO_DEPTH = {name: i for i, name in enumerate(LAYER_NAMES)}

_VMEM_LIMIT_BYTES = 32 * 1024 * 1024   # explicit; above scoped defaults, below
                                        # physical VMEM on v5e/v6e/v7x.


# ----------------------------------------------------------------------------
# Tiling helper
# ----------------------------------------------------------------------------
def _choose_num_tiles(hw_sizes, target_tile=512):
    """Number of HW-reduction grid steps such that every layer's slab splits
    into equal, 128-aligned tiles of roughly `target_tile` lanes.
    Falls back to 1 (full slab per layer) if no common split exists."""
    target = max(int(target_tile), 128)
    upper = max(1, min(hw // target for hw in hw_sizes))
    for nt in range(upper, 0, -1):
        if all(hw % nt == 0 and (nt == 1 or (hw // nt) % 128 == 0)
               for hw in hw_sizes):
            return nt
    return 1


# ----------------------------------------------------------------------------
# Pallas kernels
# ----------------------------------------------------------------------------
def _gram_kernel(f_ref, out_ref):
    """HW-tiled Gram: out (C, C) f32 accumulates F_tile @ F_tile^T per step.

    The output block index is constant, so it stays VMEM-resident across the
    grid and is written back to HBM once at the end."""
    @pl.when(pl.program_id(0) == 0)
    def _init():
        out_ref[...] = jnp.zeros_like(out_ref)

    f = f_ref[...]                                   # (C, T) bf16
    # RHS-transposed dot (== pl.dot(f, f, trans_b=True) dimension numbers):
    # MXU absorbs the transpose; f32 accumulation.
    out_ref[...] += jax.lax.dot_general(
        f, f, (((1,), (1,)), ((), ())),
        preferred_element_type=jnp.float32)


def _total_loss_kernel(*refs, num_gen, num_style, content_gen_pos,
                       style_scales, lamb):
    """Fused total style-transfer loss, gridded over HW tiles.

    refs layout (inputs, outputs, scratch):
      gen_refs[0..num_gen-1]     (C_l, T_l) bf16 tile of gen-image features
      content_ref                (C_c, T_c) bf16 tile of the content target
      sgram_refs[0..num_style-1] (C_l, C_l) f32 style Gram targets (resident)
      out_ref                    (1, 1)     f32 total loss (written last step)
      gacc_refs[0..num_style-1]  (C_l, C_l) f32 VMEM Gram accumulators
      cacc_ref                   (1, 1)     f32 VMEM content partial sum
    """
    gen_refs = refs[:num_gen]
    content_ref = refs[num_gen]
    sgram_refs = refs[num_gen + 1:num_gen + 1 + num_style]
    out_ref = refs[num_gen + 1 + num_style]
    gacc_refs = refs[num_gen + 2 + num_style:num_gen + 2 + 2 * num_style]
    cacc_ref = refs[num_gen + 2 + 2 * num_style]

    k = pl.program_id(0)
    nk = pl.num_programs(0)

    @pl.when(k == 0)
    def _init():
        cacc_ref[...] = jnp.zeros_like(cacc_ref)
        for j in range(num_style):
            gacc_refs[j][...] = jnp.zeros_like(gacc_refs[j])

    # Load each generated-feature tile exactly once; the content layer's tile
    # is reused for both the content diff and its Gram (single DMA).
    for j in range(num_gen):
        f = gen_refs[j][...]                          # (C_j, T_j) bf16
        if j == content_gen_pos:
            # Content diff in f32 (v5e has no bf16 VALU): 0.5 factor applied
            # once at finalize.
            dc = f.astype(jnp.float32) - content_ref[...].astype(jnp.float32)
            cacc_ref[...] += jnp.sum(dc * dc, keepdims=True)
        if j < num_style:
            # bf16 tiles straight into the MXU, f32 accumulation; RHS-transposed
            # dot form so no XLU transpose of the (C, T) tile.
            gacc_refs[j][...] += jax.lax.dot_general(
                f, f, (((1,), (1,)), ((), ())),
                preferred_element_type=jnp.float32)

    @pl.when(k == nk - 1)
    def _finalize():
        style = jnp.zeros((1, 1), jnp.float32)
        for j in range(num_style):
            dg = gacc_refs[j][...] - sgram_refs[j][...]
            # style_scales[j] = weight_j * 0.5 / (c*h*w)^2  (static Python float)
            style = style + style_scales[j] * jnp.sum(dg * dg, keepdims=True)
        out_ref[...] = 0.5 * cacc_ref[...] + lamb * style


# ----------------------------------------------------------------------------
# Pallas wrappers
# ----------------------------------------------------------------------------
def gram_pallas(slab_bf16, num_tiles):
    """slab: (C, HW) bf16 -> (C, C) f32 Gram.  Init-time only (style targets)."""
    c, hw = slab_bf16.shape
    t = hw // num_tiles
    return pl.pallas_call(
        _gram_kernel,
        out_shape=jax.ShapeDtypeStruct((c, c), jnp.float32),
        grid=(num_tiles,),
        in_specs=[pl.BlockSpec((c, t), lambda k: (0, k))],
        out_specs=pl.BlockSpec((c, c), lambda k: (0, 0)),
        compiler_params=pltpu.CompilerParams(
            dimension_semantics=("arbitrary",),
            vmem_limit_bytes=_VMEM_LIMIT_BYTES),
    )(slab_bf16)


def total_loss_pallas(gen_slabs, content_slab, style_grams, *, num_tiles,
                      content_gen_pos, style_scales, lamb):
    """One fused pallas_call computing the full weighted scalar loss."""
    num_gen = len(gen_slabs)
    num_style = len(style_grams)

    in_specs = []
    for s in gen_slabs:
        c, hw = s.shape
        in_specs.append(pl.BlockSpec((c, hw // num_tiles), lambda k: (0, k)))
    cc, chw = content_slab.shape
    in_specs.append(pl.BlockSpec((cc, chw // num_tiles), lambda k: (0, k)))
    for g in style_grams:
        # Constant block index -> DMA'd once, resident for the whole grid.
        in_specs.append(pl.BlockSpec(g.shape, lambda k: (0, 0)))

    scratch = [pltpu.VMEM(g.shape, jnp.float32) for g in style_grams]
    scratch.append(pltpu.VMEM((1, 1), jnp.float32))       # content partial sum

    kernel = functools.partial(
        _total_loss_kernel,
        num_gen=num_gen, num_style=num_style,
        content_gen_pos=int(content_gen_pos),
        style_scales=tuple(float(s) for s in style_scales),
        lamb=float(lamb))

    out = pl.pallas_call(
        kernel,
        out_shape=jax.ShapeDtypeStruct((1, 1), jnp.float32),
        grid=(num_tiles,),
        in_specs=in_specs,
        out_specs=pl.BlockSpec((1, 1), lambda k: (0, 0)),
        scratch_shapes=scratch,
        compiler_params=pltpu.CompilerParams(
            dimension_semantics=("arbitrary",),        # HW axis is a reduction
            vmem_limit_bytes=_VMEM_LIMIT_BYTES),
    )(*gen_slabs, content_slab, *style_grams)
    return out[0, 0]


# ----------------------------------------------------------------------------
# Synthetic "VGG features" extractor (deterministic stand-in for the model)
# TODO(synk): pretrained VGG19 / torchvision weights are not reproducible
# in-script; a small deterministic conv stack stands in for the backbone.
# ----------------------------------------------------------------------------
def init_extractor_params(key, in_ch=3, ch=8, num_layers=5):
    params = []
    for i in range(num_layers):
        key, k = jax.random.split(key)
        cin = in_ch if i == 0 else ch
        w = 0.1 * jax.random.normal(k, (ch, cin, 3, 3), jnp.float32)
        params.append(w)
    return params


def extract_features(params, image):
    """Single forward pass capturing every intermediate feature map.

    image: (1, C_in, H, W) NCHW -> list of (1, C, H, W); entry i == LAYER_NAMES[i].
    """
    feats = []
    x = image
    for w in params:
        x = jax.lax.conv_general_dilated(
            x, w, window_strides=(1, 1), padding='SAME',
            dimension_numbers=('NCHW', 'OIHW', 'NCHW'))
        x = jnp.maximum(x, 0.0)
        feats.append(x)
    return feats


def _as_slab(feat_map):
    # (1, C, H, W) -> (C, H*W) bf16 slab (half HBM traffic; f32 accumulation
    # happens inside the kernels).  The bf16 convert fuses into the conv/relu.
    _, c, h, w = feat_map.shape
    return feat_map.reshape(c, h * w).astype(jnp.bfloat16)


# ----------------------------------------------------------------------------
# TotalLoss (JAX/Pallas version of the PyTorch module)
# ----------------------------------------------------------------------------
def _total_loss_forward(params, gen_image, content_slab, style_grams, *,
                        gen_depths, num_tiles, content_gen_pos,
                        style_scales, lamb):
    feats = extract_features(params, gen_image)        # single conv pass
    gen_slabs = [_as_slab(feats[d]) for d in gen_depths]
    return total_loss_pallas(gen_slabs, content_slab, list(style_grams),
                             num_tiles=num_tiles,
                             content_gen_pos=content_gen_pos,
                             style_scales=style_scales, lamb=lamb)


class TotalLoss:
    def __init__(self, params, content_image, style_image,
                 content_layer='features.40',
                 style_weights=(0.2, 0.2, 0.2, 0.2, 0.2),
                 style_layers=LAYER_NAMES,
                 lamb=100.0,
                 tile_hint=512):
        assert content_image.shape[0] == 1 and style_image.shape[0] == 1, \
            'The batch size should be 1!'
        self.params = params
        self.lamb = float(lamb)

        content_idx = LAYER_TO_DEPTH[content_layer]
        style_idx = [LAYER_TO_DEPTH[l] for l in style_layers]

        # Generated-image layers that must be fed to the kernel: the style
        # layers, plus the content layer only if it is not already among them
        # (features.40 is both -> its slab is read from HBM exactly once).
        if content_idx in style_idx:
            gen_depths = list(style_idx)
            self.content_gen_pos = style_idx.index(content_idx)
        else:
            gen_depths = list(style_idx) + [content_idx]
            self.content_gen_pos = len(style_idx)
        self.gen_depths = tuple(gen_depths)

        # ---- cached targets (one extractor pass per target image) ----
        content_feats = extract_features(params, content_image)
        style_feats = extract_features(params, style_image)
        self.content_slab = _as_slab(content_feats[content_idx])   # (C, HW) bf16

        hw_sizes = [int(style_feats[d].shape[2] * style_feats[d].shape[3])
                    for d in self.gen_depths]
        self.num_tiles = _choose_num_tiles(hw_sizes, tile_hint)

        # Precomputed style Gram targets (f32), via the tiled gram kernel.
        self.style_grams = tuple(
            gram_pallas(_as_slab(style_feats[i]), self.num_tiles)
            for i in style_idx)

        # Static per-layer scale: weight * 0.5 / (c*h*w)^2 (baked into kernel).
        scales = []
        for w_l, i in zip(style_weights, style_idx):
            _, c, h, w = style_feats[i].shape
            scales.append(float(w_l) * 0.5 / float((c * h * w) ** 2))
        self.style_scales = tuple(scales)

        self._forward = jax.jit(functools.partial(
            _total_loss_forward,
            gen_depths=self.gen_depths, num_tiles=self.num_tiles,
            content_gen_pos=self.content_gen_pos,
            style_scales=self.style_scales, lamb=self.lamb))

    def __call__(self, gen_image):
        assert gen_image.shape[0] == 1, 'The batch size should be 1!'
        return self._forward(self.params, gen_image,
                             self.content_slab, self.style_grams)


# ----------------------------------------------------------------------------
# Pure-JAX reference (silent correctness check)
# ----------------------------------------------------------------------------
def _ref_total_loss(params, content_image, style_image, gen_image,
                    content_layer='features.40',
                    style_weights=(0.2, 0.2, 0.2, 0.2, 0.2),
                    style_layers=LAYER_NAMES, lamb=100.0,
                    slab_dtype=jnp.float32):
    """slab_dtype=bfloat16 mirrors the kernel's storage dtype exactly."""
    def slab(f):
        _, c, h, w = f.shape
        return f.reshape(c, h * w).astype(slab_dtype).astype(jnp.float32)

    cf = extract_features(params, content_image)
    sf = extract_features(params, style_image)
    gf = extract_features(params, gen_image)
    ci = LAYER_TO_DEPTH[content_layer]
    x1 = 0.5 * jnp.sum((slab(gf[ci]) - slab(cf[ci])) ** 2)
    x2 = jnp.float32(0.0)
    for w_l, layer in zip(style_weights, style_layers):
        i = LAYER_TO_DEPTH[layer]
        f1 = slab(gf[i])
        f2 = slab(sf[i])
        _, c, h, w = gf[i].shape
        g1 = jnp.dot(f1, f1.T, preferred_element_type=jnp.float32)
        g2 = jnp.dot(f2, f2.T, preferred_element_type=jnp.float32)
        x2 = x2 + w_l * (0.5 * jnp.sum((g1 - g2) ** 2) / float((c * h * w) ** 2))
    return x1 + lamb * x2


# ----------------------------------------------------------------------------
# main
# ----------------------------------------------------------------------------
if __name__ == "__main__":
    key = jax.random.PRNGKey(0)
    k_params, k_content, k_style, k_gen = jax.random.split(key, 4)

    # batch=1 (required by the module), 3-channel 16x16 images, 8-ch features
    params = init_extractor_params(k_params, in_ch=3, ch=8, num_layers=5)
    content_image = jax.random.normal(k_content, (1, 3, 16, 16), jnp.float32)
    style_image = jax.random.normal(k_style, (1, 3, 16, 16), jnp.float32)
    gen_image = jax.random.normal(k_gen, (1, 3, 16, 16), jnp.float32)

    # tile_hint=128 -> HW=256 splits into a 2-step reduction grid at this toy
    # size, so the init / accumulate / finalize path is actually exercised.
    total_loss = TotalLoss(params, content_image, style_image, tile_hint=128)
    out = jax.block_until_ready(total_loss(gen_image))

    # (1) Reference mirroring the kernel's dtype policy (bf16 slabs, f32 math).
    ref_bf16 = jax.block_until_ready(_ref_total_loss(
        params, content_image, style_image, gen_image,
        slab_dtype=jnp.bfloat16))
    assert jnp.allclose(out, ref_bf16, rtol=2e-3, atol=1e-3), (out, ref_bf16)

    # (2) End-to-end f32 reference (original module semantics); tolerance is
    # loose only because the kernel stores feature slabs in bf16.
    ref_f32 = jax.block_until_ready(_ref_total_loss(
        params, content_image, style_image, gen_image,
        slab_dtype=jnp.float32))
    assert jnp.allclose(out, ref_f32, rtol=3e-2, atol=1e-2), (out, ref_f32)

    print("KERNEL_OK")
</pallas_src>

<mosaic_0001>
module attributes {stable_mosaic.version = 11 : i64} {
  func.func @_gram_kernel(%arg0: i32, %arg1: memref<8x128xbf16, #tpu.memory_space<vmem>>, %arg2: memref<8x8xf32, #tpu.memory_space<vmem>>) attributes {dimension_semantics = [#tpu.dimension_semantics<arbitrary>], iteration_bounds = array<i64: 2>, scalar_prefetch = 0 : i64, scratch_operands = 0 : i64, tpu.core_type = #tpu.core_type<tc>, window_params = [{transform_indices = @transform_0, window_bounds = array<i64: 8, 128>}, {pipeline_mode = #tpu.pipeline_mode<synchronous>, transform_indices = @transform_1, window_bounds = array<i64: 8, 8>}]} {
    %c0_i32 = arith.constant 0 : i32
    %0 = arith.cmpi eq, %arg0, %c0_i32 : i32
    %1 = arith.extui %0 : i1 to i32
    %c0_i32_0 = arith.constant 0 : i32
    %2 = arith.cmpi ne, %1, %c0_i32_0 : i32
    scf.if %2 {
      %cst_6 = arith.constant 0.000000e+00 : f32
      %8 = vector.broadcast %cst_6 : f32 to vector<8x8xf32>
      %c0_7 = arith.constant 0 : index
      %c0_8 = arith.constant 0 : index
      %9 = vector.load %arg2[%c0_7, %c0_8] : memref<8x8xf32, #tpu.memory_space<vmem>>, vector<8x8xf32>
      tpu.vector_store %arg2[%c0_7, %c0_8], %8 {strides = array<i32>} : memref<8x8xf32, #tpu.memory_space<vmem>>, vector<8x8xf32>,
    } else {
    }
    %c0 = arith.constant 0 : index
    %c0_1 = arith.constant 0 : index
    %3 = vector.load %arg1[%c0, %c0_1] : memref<8x128xbf16, #tpu.memory_space<vmem>>, vector<8x128xbf16>
    %c0_2 = arith.constant 0 : index
    %c0_3 = arith.constant 0 : index
    %4 = vector.load %arg2[%c0_2, %c0_3] : memref<8x8xf32, #tpu.memory_space<vmem>>, vector<8x8xf32>
    %cst = arith.constant dense<0.000000e+00> : vector<8x8xf32>
    %5 = tpu.matmul %3, %3, %cst {dimension_numbers = #tpu.dot_dimension_numbers<[1], [1], [0], [0], [0, 0, 1, 0], [], []>} : vector<8x128xbf16>, vector<8x128xbf16>, vector<8x8xf32> -> vector<8x8xf32>
    %6 = arith.addf %4, %5 : vector<8x8xf32>
    %c0_4 = arith.constant 0 : index
    %c0_5 = arith.constant 0 : index
    %7 = vector.load %arg2[%c0_4, %c0_5] : memref<8x8xf32, #tpu.memory_space<vmem>>, vector<8x8xf32>
    tpu.vector_store %arg2[%c0_4, %c0_5], %6 {strides = array<i32>} : memref<8x8xf32, #tpu.memory_space<vmem>>, vector<8x8xf32>,
    return
  }
  func.func @transform_0(%arg0: i32) -> (i32, i32) {
    %c0_i32 = arith.constant 0 : i32
    %c0_i32_0 = arith.constant 0 : i32
    return %c0_i32, %arg0 : i32, i32
  }
  func.func @transform_1(%arg0: i32) -> (i32, i32) {
    %c0_i32 = arith.constant 0 : i32
    %c0_i32_0 = arith.constant 0 : i32
    %c0_i32_1 = arith.constant 0 : i32
    return %c0_i32, %c0_i32_0 : i32, i32
  }
}

</mosaic_0001>

<llo_original>
// kernel: tpu_custom_call.1
$region0: #{tpu_custom_call.1}
  #allocation0 [shape = 'u32[]', space=smem, size = 0x4, offset = 0x4, fixed_abs, tag = 'smem constant byte address 0x4 - core index']
  #allocation1 [shape = 'u32[144,128]{1,0:T(1,128)}', space=vmem, size = 0x12000, scoped, tag = 'internal scratch']
  %s0 = inlined_call_operand.hbm [shape: bf16[8,256], index: 0, kind: input, shape index: {}]
  %s1 = inlined_call_operand.hbm [shape: f32[8,8], index: 1, kind: output, shape index: {}]
  %s2 = sld [smem:[#allocation0]]
  $region45: #{tpu_custom_call.1} parent=0
    _
  %s4 = ssub.s32 1, %s2
  %s5 = scalar_select 0, %s4, %s2
  $region1: #{tpu_custom_call.1} parent=0
    #allocation2 [shape = 'u8[4096]{0}', space=vmem, size = 0x1000, scoped, tag = 'input window, operand 0']
    #allocation3 [shape = 's32[2]{0}', space=sflag, size = 0x8, scoped, tag = 'scoped memory for tpu_custom_call.1']
    #allocation4 [shape = 's32[2]{0}', space=sflag, size = 0x8, scoped, tag = 'scoped memory for tpu_custom_call.1']
    #allocation5 [shape = 'u8[4096]{0}', space=vmem, size = 0x1000, scoped, tag = 'output window, operand 0, single buffered']
    %6 = vsyncpa [#allocation3], 0
    %s7 = scalar_lea.sflag [#allocation3], 1
    %8 = vsyncpa %s7, 0
    %9 = vsyncpa [#allocation4], 0
    loop: start=0, step=1, limit=4
    $region2: #{tpu_custom_call.1} parent=1 // loop_pre_header
      _
    $region3: #{tpu_custom_call.1} parent=1 // loop_header
      %s11 = sphi 0, %s15
      %p12 = scmp.ge.s32.totalorder %s11, 4
      %s21 = sphi 0, %s23
      %s24 = sphi 0, %s21
      %s25 = sphi 0, %s24
      %s41 = sphi 0, %s25
      %s45 = sphi 0, %s45
      %s47 = sphi 0, %s45
      %s48 = sphi 0, %s47
      %s62 = sphi 0, %s48
    $region4: #{tpu_custom_call.1} parent=1 // loop_header_branch
      %14 = sbr.rel (%p12) target = $region8
    $region5: #{tpu_custom_call.1} parent=1 // loop_body
      %s16 = ssub.s32 %s11, 1
      %s17 = ssub.s32 %s11, 2
      %s18 = sadd.s32 %s11, 1
      %s19 = ssub.s32 %s11, %s18
      %p20 = scmp.eq.s32.totalorder %s19, 0
      %s22 = sadd.s32 %s21, 1
      %s23 = scalar_select %p20, %s21, %s22
      %p26 = pneg %p20
      %p27 = scmp.eq.s32.totalorder %s11, 1
      %p28 = por %p26, %p27
      %p29 = scmp.ne.s32.totalorder %s21, %s24
      %p30 = scmp.eq.s32.totalorder %s11, 0
      %p31 = por %p29, %p30
      %p32 = scmp.ne.s32.totalorder %s21, %s24
      %p33 = scmp.eq.s32.totalorder %s16, 1
      %p34 = por %p32, %p33
      %p35 = scmp.ne.s32.totalorder %s24, %s25
      %p36 = scmp.eq.s32.totalorder %s16, 0
      %p37 = por %p35, %p36
      %p38 = scmp.ne.s32.totalorder %s24, %s25
      %p39 = scmp.eq.s32.totalorder %s17, 1
      %p40 = por %p38, %p39
      %p42 = scmp.ne.s32.totalorder %s25, %s41
      %p43 = scmp.eq.s32.totalorder %s17, 0
      %p44 = por %p42, %p43
      %s46 = sadd.s32 %s45, 1
      %p49 = scmp.eq.s32.totalorder %s11, 1
      %p50 = scmp.ne.s32.totalorder %s45, %s47
      %p51 = scmp.eq.s32.totalorder %s11, 0
      %p52 = por %p50, %p51
      %p53 = scmp.ne.s32.totalorder %s45, %s47
      %p54 = scmp.eq.s32.totalorder %s16, 1
      %p55 = por %p53, %p54
      %p56 = scmp.ne.s32.totalorder %s47, %s48
      %p57 = scmp.eq.s32.totalorder %s16, 0
      %p58 = por %p56, %p57
      %p59 = scmp.ne.s32.totalorder %s47, %s48
      %p60 = scmp.eq.s32.totalorder %s17, 1
      %p61 = por %p59, %p60
      %p63 = scmp.ne.s32.totalorder %s48, %s62
      %p64 = scmp.eq.s32.totalorder %s17, 0
      %p65 = por %p63, %p64
      %p66 = scmp.le.s32.totalorder 1, %s11
      %p67 = scmp.lt.s32.totalorder %s11, 3
      %p68 = pnand %p66, %p67
      %p69 = pneg %p68
      // Predicated region
      $region9: #{tpu_custom_call.1} parent=5 // pred_check
        _
      $region10: #{tpu_custom_call.1} parent=5 // pred_check_branch
        %71 = sbr.rel (%p68) target = $region12
      $region11: #{tpu_custom_call.1} parent=5 // pred_region
        %s72 = ssub.s32 %s11, 1
      $region12: #{tpu_custom_call.1} parent=5 // pred_fallthru
        _
      %p73 = scmp.lt.s32.totalorder %s11, 2
      // Predicated region
      $region13: #{tpu_custom_call.1} parent=5 // pred_check
        %p74 = pneg %p73
      $region14: #{tpu_custom_call.1} parent=5 // pred_check_branch
        %76 = sbr.rel (%p74) target = $region16
      $region15: #{tpu_custom_call.1} parent=5 // pred_region
        // Predicated region
        $region17: #{tpu_custom_call.1} parent=15 // pred_check
          %p77 = pneg %p31
        $region18: #{tpu_custom_call.1} parent=15 // pred_check_branch
          %79 = sbr.rel (%p77) target = $region20
        $region19: #{tpu_custom_call.1} parent=15 // pred_region
          %s80 = sand.u32 %s21, 1
          %s81 = scalar_lea.sflag [#allocation3], %s80
          %s82 = sand.u32 %s21, 1
          %s83 = smul.addr %s82, 4
          %s84 = scalar_lea.vmem [#allocation2], %s83
          %s86 = ssub.s32 64, 64
          %87 = vsyncadd %s81, %s86
          %s88 = smul.addr %s11, 64
          %s89 = scalar_lea.hbm %s0, %s88
          %s91 = sshll.u32 %s84, 4
          %s92 = int_to_ptr.vmem [resolvable:$true] %s91
          %94 = dma.hbm_to_vmem [thread:$0]  %s89, 64, %s92, %s81
        $region20: #{tpu_custom_call.1} parent=15 // pred_fallthru
          _
      $region16: #{tpu_custom_call.1} parent=5 // pred_fallthru
        _
      %p95 = scmp.le.s32.totalorder 1, %s11
      %p96 = scmp.lt.s32.totalorder %s11, 3
      %p97 = pnand %p95, %p96
      %p98 = pneg %p97
      // Predicated region
      $region21: #{tpu_custom_call.1} parent=5 // pred_check
        _
      $region22: #{tpu_custom_call.1} parent=5 // pred_check_branch
        %100 = sbr.rel (%p97) target = $region24
      $region23: #{tpu_custom_call.1} parent=5 // pred_region
        %s101 = ssub.s32 %s11, 1
        %s102 = sand.u32 %s24, 1
        %s103 = scalar_lea.sflag [#allocation3], %s102
        %s104 = sand.u32 %s24, 1
        %s105 = smul.addr %s104, 4
        %s106 = scalar_lea.vmem [#allocation2], %s105
        // Predicated region
        $region25: #{tpu_custom_call.1} parent=23 // pred_check
          %p107 = pneg %p37
        $region26: #{tpu_custom_call.1} parent=23 // pred_check_branch
          %109 = sbr.rel (%p107) target = $region28
        $region27: #{tpu_custom_call.1} parent=23 // pred_region
          %110 = dma.done %s103, 64
        $region28: #{tpu_custom_call.1} parent=23 // pred_fallthru
          _
        %s111 = sand.u32 %s24, 1
        %s112 = scalar_lea.sflag [#allocation3], %s111
        %s113 = sand.u32 %s24, 1
        %s114 = smul.addr %s113, 4
        %s115 = scalar_lea.vmem [#allocation2], %s114
        %p116 = pneg %p37
        %p117 = pneg %p34
        %p118 = pneg %p58
        %p119 = pneg %p55
        %p121 = scmp.eq.s32.totalorder %s16, 0
        // Predicated region
        $region29: #{tpu_custom_call.1} parent=23 // pred_check
          %p122 = pneg %p121
        $region30: #{tpu_custom_call.1} parent=23 // pred_check_branch
          %124 = sbr.rel (%p122) target = $region32
        $region31: #{tpu_custom_call.1} parent=23 // pred_region
          %vm125 = vcmask 64512
          %126 = vst.msk [vmem:[#allocation5] sm:$0xff] %vm125, 0.0
        $region32: #{tpu_custom_call.1} parent=23 // pred_fallthru
          _
        %v127 = vld [vmem:[%s106] sm:$0xf]
        %v128 = vld [vmem:[#allocation5] sm:$0xff]
        %129 = vmatprep.subr.bf16.mxu0 0
        %130 = vmatpush1.bf16.xpose.msra.mxu0 %v127
        %131 = vmatprep.subr.bf16.mxu0 0
        %132 = vmatpush1.bf16.xpose.msra.mxu0 0
        %133 = vmatprep.subr.bf16.mxu0 0
        %134 = vmatpush1.bf16.xpose.msra.mxu0 0
        %135 = vmatprep.subr.bf16.mxu0 0
        %136 = vmatpush1.bf16.xpose.msra.mxu0 0
        %137 = vmatprep.subr.bf16.mxu0 0
        %138 = vmatpush1.bf16.xpose.msra.mxu0 0
        %139 = vmatprep.subr.bf16.mxu0 0
        %140 = vmatpush1.bf16.xpose.msra.mxu0 0
        %141 = vmatprep.subr.bf16.mxu0 0
        %142 = vmatpush1.bf16.xpose.msra.mxu0 0
        %143 = vmatprep.subr.bf16.mxu0 0
        %144 = vmatpush1.bf16.xpose.msra.mxu0 0
        %145 = vmatprep.subr.bf16.mxu0 0
        %146 = vmatpush1.bf16.xpose.msra.mxu0 0
        %147 = vmatprep.subr.bf16.mxu0 0
        %148 = vmatpush1.bf16.xpose.msra.mxu0 0
        %149 = vmatprep.subr.bf16.mxu0 0
        %150 = vmatpush1.bf16.xpose.msra.mxu0 0
        %151 = vmatprep.subr.bf16.mxu0 0
        %152 = vmatpush1.bf16.xpose.msra.mxu0 0
        %153 = vmatprep.subr.bf16.mxu0 0
        %154 = vmatpush1.bf16.xpose.msra.mxu0 0
        %155 = vmatprep.subr.bf16.mxu0 0
        %156 = vmatpush1.bf16.xpose.msra.mxu0 0
        %157 = vmatprep.subr.bf16.mxu0 0
        %158 = vmatpush1.bf16.xpose.msra.mxu0 0
        %159 = vmatprep.subr.bf16.mxu0 0
        %160 = vmatpush1.bf16.xpose.msra.mxu0 0
        %161 = vmatprep.mubr.bf16.mxu0 0
        %162 = vmatmul.mubr.bf16.gmra.mrb[0].mxu0 %v127
        %v163 = vpop.f32.mrb[0].mxu0
        %v164 = vadd.f32 0.0, %v163
        %v165 = vpop.f32.mrb[0].mxu0
        %v166 = vpop.f32.mrb[0].mxu0
        %v167 = vpop.f32.mrb[0].mxu0
        %168 = vdwg.mxu0
        %v169 = vadd.f32 %v128, %v164
        %vm170 = vcmask 64512
        %171 = vst.msk [vmem:[#allocation5] sm:$0xff] %vm170, %v169
        // Predicated region
        $region33: #{tpu_custom_call.1} parent=23 // pred_check
          %p172 = pneg %p55
        $region34: #{tpu_custom_call.1} parent=23 // pred_check_branch
          %174 = sbr.rel (%p172) target = $region36
        $region35: #{tpu_custom_call.1} parent=23 // pred_region
          %s176 = ssub.s32 128, 128
          %177 = vsyncadd [#allocation4], %s176
          %s179 = sshll.u32 [#allocation5], 4
          %s180 = int_to_ptr.vmem [resolvable:$true] %s179
          %182 = dma.vmem_to_hbm [thread:$0]  %s180, 128, %s1, [#allocation4]
        $region36: #{tpu_custom_call.1} parent=23 // pred_fallthru
          _
        // Predicated region
        $region37: #{tpu_custom_call.1} parent=23 // pred_check
          %p183 = pneg %p55
        $region38: #{tpu_custom_call.1} parent=23 // pred_check_branch
          %185 = sbr.rel (%p183) target = $region40
        $region39: #{tpu_custom_call.1} parent=23 // pred_region
          %186 = dma.done [#allocation4], 128
        $region40: #{tpu_custom_call.1} parent=23 // pred_fallthru
          _
      $region24: #{tpu_custom_call.1} parent=5 // pred_fallthru
        _
      %p187 = scmp.le.s32.totalorder 2, %s11
      // Predicated region
      $region41: #{tpu_custom_call.1} parent=5 // pred_check
        %p188 = pneg %p187
      $region42: #{tpu_custom_call.1} parent=5 // pred_check_branch
        %190 = sbr.rel (%p188) target = $region44
      $region43: #{tpu_custom_call.1} parent=5 // pred_region
        %s191 = ssub.s32 %s11, 2
      $region44: #{tpu_custom_call.1} parent=5 // pred_fallthru
        _
    $region6: #{tpu_custom_call.1} parent=1 // loop_footer
      %s15 = sadd.s32 1, %s11
    $region7: #{tpu_custom_call.1} parent=1 // loop_footer_branch
      %10 = sbr.rel target = $region3
    $region8: #{tpu_custom_call.1} parent=1 // loop_exit
      _
    %192 = vsyncpa [#allocation3], 1
    %s193 = scalar_lea.sflag [#allocation3], 1
    %194 = vsyncpa %s193, 1
    %195 = vsyncpa [#allocation4], 1
    %s196 = scalar_lea.sflag [#allocation4], 1
    %197 = vsyncpa %s196, 1

</llo_original>
